<compile_context>
chip_gen: v7x
topology: tpu7x:2x2x1
jax: 0.10.0
libtpu: 0.0.40
codegen_flags: <defaults>
</compile_context>

<pallas_src>
import functools

import jax
import jax.numpy as jnp
from jax import lax
from jax.experimental import pallas as pl
from jax.experimental.pallas import tpu as pltpu


def _round_up(x, m):
    return ((x + m - 1) // m) * m


def _pick_batch_block(n, target=8):
    """Largest divisor of n that is <= target and still leaves >= 2 grid steps."""
    best = None
    for cand in range(1, min(n, target) + 1):
        if n % cand == 0 and n // cand >= 2:
            best = cand
    return best if best is not None else n


def _dot_attn_kernel(q_ref, v_ref, out_ref, attn_ref, *, ti_valid):
    # q_ref: (To, H) or (Nb, To, H); v_ref: (Ti, H) or (Nb, Ti, H)  [padded shapes]
    q = q_ref[...]
    v = v_ref[...]

    if q.ndim == 2:
        dn_scores = (((1,), (1,)), ((), ()))      # q @ v^T   -> (To, Ti)
        dn_out = (((1,), (0,)), ((), ()))         # attn @ v  -> (To, H)
    else:
        dn_scores = (((2,), (2,)), ((0,), (0,)))  # batched over Nb
        dn_out = (((2,), (1,)), ((0,), (0,)))

    # MXU matmul in the operands' native dtype, f32 accumulation.
    scores = lax.dot_general(q, v, dn_scores, preferred_element_type=jnp.float32)

    # Mask padded key columns so they don't contribute to the softmax.
    if ti_valid != scores.shape[-1]:
        col = lax.broadcasted_iota(jnp.int32, scores.shape, scores.ndim - 1)
        scores = jnp.where(col < ti_valid, scores, jnp.finfo(jnp.float32).min)

    # Numerically stable softmax over Ti, kept in f32 (v5e has no bf16 VPU/EUP path).
    m = jnp.max(scores, axis=-1, keepdims=True)
    e = jnp.exp(scores - m)
    denom = jnp.sum(e, axis=-1, keepdims=True)
    # EUP approx reciprocal + one Newton step: divide stays off the VALU, result ~f32.
    inv = pl.reciprocal(denom, approx=True)
    inv = inv * (2.0 - denom * inv)
    attn = e * inv

    # Second matmul: feed attn to the MXU in the values' dtype (bf16 stays bf16).
    out = lax.dot_general(attn.astype(v.dtype), v, dn_out,
                          preferred_element_type=jnp.float32)

    attn_ref[...] = attn.astype(attn_ref.dtype)
    out_ref[...] = out.astype(out_ref.dtype)


def dot_product_attention(queries, values):
    """queries: (N, To, H), values: (N, Ti, H) -> (output (N, To, H), attn (N, To, Ti))."""
    N, To, H = queries.shape
    Nv, Ti, Hv = values.shape
    assert Nv == N and Hv == H

    # Lane/sublane alignment: last dims -> multiples of 128 (dense stores, MXU-friendly),
    # second-to-last -> multiples of 8.
    To_p = _round_up(To, 8)
    Ti_p = _round_up(Ti, 128)
    H_p = _round_up(H, 128)

    q_p = queries
    if (To_p, H_p) != (To, H):
        q_p = jnp.pad(queries, ((0, 0), (0, To_p - To), (0, H_p - H)))
    v_p = values
    if (Ti_p, H_p) != (Ti, H):
        v_p = jnp.pad(values, ((0, 0), (0, Ti_p - Ti), (0, H_p - H)))

    nb = _pick_batch_block(N)
    grid = (N // nb,)
    # Squeeze the batch dim out of the kernel view when one example per step.
    bdim = None if nb == 1 else nb
    bmap = lambda b: (b, 0, 0)

    kernel = functools.partial(_dot_attn_kernel, ti_valid=Ti)

    out_shapes = (
        jax.ShapeDtypeStruct((N, To_p, H_p), queries.dtype),
        jax.ShapeDtypeStruct((N, To_p, Ti_p), queries.dtype),
    )

    # Raise the scoped-VMEM limit only if the (double-buffered) tiles require it.
    itemsize = jnp.dtype(queries.dtype).itemsize
    tile_elems = nb * (To_p * H_p + Ti_p * H_p + To_p * H_p + To_p * Ti_p)
    vmem_est = 2 * tile_elems * itemsize + nb * (To_p * Ti_p + To_p * H_p) * 4
    compiler_kwargs = dict(dimension_semantics=("parallel",))
    if vmem_est > 32 * 1024 * 1024:
        compiler_kwargs["vmem_limit_bytes"] = min(int(vmem_est * 3 // 2), 64 * 1024 * 1024)

    out_p, attn_p = pl.pallas_call(
        kernel,
        out_shape=out_shapes,
        grid_spec=pltpu.PrefetchScalarGridSpec(
            num_scalar_prefetch=0,
            grid=grid,
            in_specs=[
                pl.BlockSpec((bdim, To_p, H_p), bmap),
                pl.BlockSpec((bdim, Ti_p, H_p), bmap),
            ],
            out_specs=[
                pl.BlockSpec((bdim, To_p, H_p), bmap),
                pl.BlockSpec((bdim, To_p, Ti_p), bmap),
            ],
        ),
        compiler_params=pltpu.CompilerParams(**compiler_kwargs),
    )(q_p, v_p)

    # Strip the lane/sublane padding.
    return out_p[:, :To, :H], attn_p[:, :To, :Ti]


def _reference(queries, values):
    scores = jnp.einsum("bth,bsh->bts", queries, values)
    attn = jax.nn.softmax(scores, axis=-1)
    out = jnp.einsum("bts,bsh->bth", attn, values)
    return out, attn


if __name__ == "__main__":
    key = jax.random.PRNGKey(0)
    k_q, k_v = jax.random.split(key)

    N, To, Ti, H = 2, 8, 8, 32  # small shapes consistent with the module's forward
    queries = jax.random.normal(k_q, (N, To, H), dtype=jnp.float32)
    values = jax.random.normal(k_v, (N, Ti, H), dtype=jnp.float32)

    out, attn = dot_product_attention(queries, values)
    out = jax.block_until_ready(out)
    attn = jax.block_until_ready(attn)

    ref_out, ref_attn = _reference(queries, values)
    assert out.shape == (N, To, H) and attn.shape == (N, To, Ti)
    assert jnp.allclose(out, ref_out, atol=1e-3, rtol=1e-3)
    assert jnp.allclose(attn, ref_attn, atol=1e-3, rtol=1e-3)
    assert jnp.allclose(jnp.sum(attn, axis=-1), 1.0, atol=1e-3)

    # bf16 path: native-dtype MXU operands with f32 accumulation (smoke test).
    out16, attn16 = dot_product_attention(queries.astype(jnp.bfloat16),
                                          values.astype(jnp.bfloat16))
    out16 = jax.block_until_ready(out16)
    assert out16.shape == (N, To, H) and attn16.shape == (N, To, Ti)
    assert bool(jnp.all(jnp.isfinite(out16.astype(jnp.float32))))

    print("KERNEL_OK")
</pallas_src>

<mosaic_0001>
module attributes {stable_mosaic.version = 11 : i64} {
  func.func @_dot_attn_kernel(%arg0: i32, %arg1: memref<1x8x128xf32, #tpu.memory_space<vmem>>, %arg2: memref<1x128x128xf32, #tpu.memory_space<vmem>>, %arg3: memref<1x8x128xf32, #tpu.memory_space<vmem>>, %arg4: memref<1x8x128xf32, #tpu.memory_space<vmem>>) attributes {dimension_semantics = [#tpu.dimension_semantics<parallel>], iteration_bounds = array<i64: 2>, scalar_prefetch = 0 : i64, scratch_operands = 0 : i64, tpu.core_type = #tpu.core_type<tc>, window_params = [{transform_indices = @transform_0, window_bounds = array<i64: 1, 8, 128>}, {transform_indices = @transform_1, window_bounds = array<i64: 1, 128, 128>}, {transform_indices = @transform_2, window_bounds = array<i64: 1, 8, 128>}, {transform_indices = @transform_3, window_bounds = array<i64: 1, 8, 128>}]} {
    %c0 = arith.constant 0 : index
    %c0_0 = arith.constant 0 : index
    %c0_1 = arith.constant 0 : index
    %0 = vector.load %arg1[%c0, %c0_0, %c0_1] : memref<1x8x128xf32, #tpu.memory_space<vmem>>, vector<1x8x128xf32>
    %1 = vector.shape_cast %0 : vector<1x8x128xf32> to vector<8x128xf32>
    %c0_2 = arith.constant 0 : index
    %c0_3 = arith.constant 0 : index
    %c0_4 = arith.constant 0 : index
    %2 = vector.load %arg2[%c0_2, %c0_3, %c0_4] : memref<1x128x128xf32, #tpu.memory_space<vmem>>, vector<1x128x128xf32>
    %3 = vector.shape_cast %2 : vector<1x128x128xf32> to vector<128x128xf32>
    %cst = arith.constant dense<0.000000e+00> : vector<8x128xf32>
    %4 = tpu.matmul %1, %3, %cst {dimension_numbers = #tpu.dot_dimension_numbers<[1], [1], [0], [0], [0, 0, 1, 0], [], []>} : vector<8x128xf32>, vector<128x128xf32>, vector<8x128xf32> -> vector<8x128xf32>
    %5 = tpu.iota {dimensions = array<i32: 1>} : vector<8x128xi32>
    %c8_i32 = arith.constant 8 : i32
    %6 = vector.broadcast %c8_i32 : i32 to vector<8x128xi32>
    %7 = arith.cmpi slt, %5, %6 : vector<8x128xi32>
    %cst_5 = arith.constant -3.40282347E+38 : f32
    %8 = vector.broadcast %cst_5 : f32 to vector<8x128xf32>
    %9 = arith.select %7, %4, %8 : vector<8x128xi1>, vector<8x128xf32>
    %cst_6 = arith.constant dense<0xFF800000> : vector<8xf32>
    %10 = vector.multi_reduction <maximumf>, %9, %cst_6 [1] : vector<8x128xf32> to vector<8xf32>
    %11 = vector.shape_cast %10 : vector<8xf32> to vector<8x1xf32>
    %12 = vector.broadcast %11 : vector<8x1xf32> to vector<8x128xf32>
    %13 = arith.subf %9, %12 : vector<8x128xf32>
    %14 = math.exp %13 : vector<8x128xf32>
    %cst_7 = arith.constant dense<0.000000e+00> : vector<8xf32>
    %15 = vector.multi_reduction <add>, %14, %cst_7 [1] : vector<8x128xf32> to vector<8xf32>
    %16 = vector.shape_cast %15 : vector<8xf32> to vector<8x1xf32>
    %17 = tpu.reciprocal %16 {approx = true} : vector<8x1xf32> -> vector<8x1xf32>
    %18 = arith.mulf %16, %17 : vector<8x1xf32>
    %cst_8 = arith.constant 2.000000e+00 : f32
    %19 = vector.broadcast %cst_8 : f32 to vector<8x1xf32>
    %20 = arith.subf %19, %18 : vector<8x1xf32>
    %21 = arith.mulf %17, %20 : vector<8x1xf32>
    %22 = vector.broadcast %21 : vector<8x1xf32> to vector<8x128xf32>
    %23 = arith.mulf %14, %22 : vector<8x128xf32>
    %cst_9 = arith.constant dense<0.000000e+00> : vector<8x128xf32>
    %24 = tpu.matmul %23, %3, %cst_9 {dimension_numbers = #tpu.dot_dimension_numbers<[1], [0], [0], [1], [0, 0, 1, 1], [], []>} : vector<8x128xf32>, vector<128x128xf32>, vector<8x128xf32> -> vector<8x128xf32>
    %c0_10 = arith.constant 0 : index
    %c0_11 = arith.constant 0 : index
    %c0_12 = arith.constant 0 : index
    %25 = vector.load %arg4[%c0_10, %c0_11, %c0_12] : memref<1x8x128xf32, #tpu.memory_space<vmem>>, vector<1x8x128xf32>
    %26 = vector.shape_cast %25 : vector<1x8x128xf32> to vector<8x128xf32>
    %27 = vector.shape_cast %23 : vector<8x128xf32> to vector<1x8x128xf32>
    tpu.vector_store %arg4[%c0_10, %c0_11, %c0_12], %27 {strides = array<i32>} : memref<1x8x128xf32, #tpu.memory_space<vmem>>, vector<1x8x128xf32>,
    %c0_13 = arith.constant 0 : index
    %c0_14 = arith.constant 0 : index
    %c0_15 = arith.constant 0 : index
    %28 = vector.load %arg3[%c0_13, %c0_14, %c0_15] : memref<1x8x128xf32, #tpu.memory_space<vmem>>, vector<1x8x128xf32>
    %29 = vector.shape_cast %28 : vector<1x8x128xf32> to vector<8x128xf32>
    %30 = vector.shape_cast %24 : vector<8x128xf32> to vector<1x8x128xf32>
    tpu.vector_store %arg3[%c0_13, %c0_14, %c0_15], %30 {strides = array<i32>} : memref<1x8x128xf32, #tpu.memory_space<vmem>>, vector<1x8x128xf32>,
    return
  }
  func.func @transform_0(%arg0: i32) -> (i32, i32, i32) {
    %c0_i32 = arith.constant 0 : i32
    %c0_i32_0 = arith.constant 0 : i32
    %c0_i32_1 = arith.constant 0 : i32
    return %arg0, %c0_i32, %c0_i32_0 : i32, i32, i32
  }
  func.func @transform_1(%arg0: i32) -> (i32, i32, i32) {
    %c0_i32 = arith.constant 0 : i32
    %c0_i32_0 = arith.constant 0 : i32
    %c0_i32_1 = arith.constant 0 : i32
    return %arg0, %c0_i32, %c0_i32_0 : i32, i32, i32
  }
  func.func @transform_2(%arg0: i32) -> (i32, i32, i32) {
    %c0_i32 = arith.constant 0 : i32
    %c0_i32_0 = arith.constant 0 : i32
    %c0_i32_1 = arith.constant 0 : i32
    return %arg0, %c0_i32, %c0_i32_0 : i32, i32, i32
  }
  func.func @transform_3(%arg0: i32) -> (i32, i32, i32) {
    %c0_i32 = arith.constant 0 : i32
    %c0_i32_0 = arith.constant 0 : i32
    %c0_i32_1 = arith.constant 0 : i32
    return %arg0, %c0_i32, %c0_i32_0 : i32, i32, i32
  }
}

</mosaic_0001>

<llo_original>
// kernel: tpu_custom_call.1
$region0: #{tpu_custom_call.1}
  #allocation0 [shape = 'u32[]', space=smem, size = 0x4, offset = 0x4, fixed_abs, tag = 'smem constant byte address 0x4 - core index']
  #allocation1 [shape = 'u32[144,128]{1,0:T(1,128)}', space=vmem, size = 0x12000, scoped, tag = 'internal scratch']
  %s0 = inlined_call_operand.hbm [shape: f32[2,8,128], index: 0, kind: input, shape index: {}]
  %s1 = inlined_call_operand.hbm [shape: f32[2,128,128], index: 1, kind: input, shape index: {}]
  %s2 = inlined_call_operand.hbm [shape: f32[2,8,128], index: 2, kind: output, shape index: {0}]
  %s3 = inlined_call_operand.hbm [shape: f32[2,8,128], index: 3, kind: output, shape index: {1}]
  %4 = xla_tuple %s2, %s3
  %s5 = sld [smem:[#allocation0]]
  $region57: #{tpu_custom_call.1} parent=0
    _
  %s7 = ssub.s32 1, %s5
  %s8 = scalar_select 0, %s7, %s5
  $region1: #{tpu_custom_call.1} parent=0
    #allocation2 [shape = 'u8[8192]{0}', space=vmem, size = 0x2000, scoped, tag = 'input window, operand 0']
    #allocation3 [shape = 's32[2]{0}', space=sflag, size = 0x8, scoped, tag = 'scoped memory for tpu_custom_call.1']
    #allocation4 [shape = 's32[2]{0}', space=sflag, size = 0x8, scoped, tag = 'scoped memory for tpu_custom_call.1']
    #allocation5 [shape = 'u8[131072]{0}', space=vmem, size = 0x20000, scoped, tag = 'input window, operand 1']
    #allocation6 [shape = 's32[2]{0}', space=sflag, size = 0x8, scoped, tag = 'scoped memory for tpu_custom_call.1']
    #allocation7 [shape = 'u8[8192]{0}', space=vmem, size = 0x2000, scoped, tag = 'output window, operand 0']
    #allocation8 [shape = 'u8[8192]{0}', space=vmem, size = 0x2000, scoped, tag = 'output window, operand 1']
    #allocation9 [shape = 's32[2]{0}', space=sflag, size = 0x8, scoped, tag = 'scoped memory for tpu_custom_call.1']
    %9 = vsyncpa [#allocation3], 0
    %s10 = scalar_lea.sflag [#allocation3], 1
    %11 = vsyncpa %s10, 0
    %12 = vsyncpa [#allocation6], 0
    %s13 = scalar_lea.sflag [#allocation6], 1
    %14 = vsyncpa %s13, 0
    %15 = vsyncpa [#allocation4], 0
    %s16 = scalar_lea.sflag [#allocation4], 1
    %17 = vsyncpa %s16, 0
    %18 = vsyncpa [#allocation9], 0
    %s19 = scalar_lea.sflag [#allocation9], 1
    %20 = vsyncpa %s19, 0
    loop: start=0, step=1, limit=4
    $region2: #{tpu_custom_call.1} parent=1 // loop_pre_header
      _
    $region3: #{tpu_custom_call.1} parent=1 // loop_header
      %s22 = sphi 0, %s26
      %p23 = scmp.ge.s32.totalorder %s22, 4
      %s32 = sphi 0, %s34
      %s35 = sphi 0, %s32
      %s36 = sphi 0, %s35
      %s52 = sphi 0, %s36
      %s58 = sphi 0, %s60
      %s61 = sphi 0, %s58
      %s62 = sphi 0, %s61
      %s78 = sphi 0, %s62
      %s84 = sphi 0, %s86
      %s87 = sphi 0, %s84
      %s88 = sphi 0, %s87
      %s104 = sphi 0, %s88
      %s110 = sphi 0, %s112
      %s113 = sphi 0, %s110
      %s114 = sphi 0, %s113
      %s130 = sphi 0, %s114
    $region4: #{tpu_custom_call.1} parent=1 // loop_header_branch
      %25 = sbr.rel (%p23) target = $region8
    $region5: #{tpu_custom_call.1} parent=1 // loop_body
      %s27 = ssub.s32 %s22, 1
      %s28 = ssub.s32 %s22, 2
      %s29 = sadd.s32 %s22, 1
      %s30 = ssub.s32 %s22, %s29
      %p31 = scmp.eq.s32.totalorder %s30, 0
      %s33 = sadd.s32 %s32, 1
      %s34 = scalar_select %p31, %s32, %s33
      %p37 = pneg %p31
      %p38 = scmp.eq.s32.totalorder %s22, 1
      %p39 = por %p37, %p38
      %p40 = scmp.ne.s32.totalorder %s32, %s35
      %p41 = scmp.eq.s32.totalorder %s22, 0
      %p42 = por %p40, %p41
      %p43 = scmp.ne.s32.totalorder %s32, %s35
      %p44 = scmp.eq.s32.totalorder %s27, 1
      %p45 = por %p43, %p44
      %p46 = scmp.ne.s32.totalorder %s35, %s36
      %p47 = scmp.eq.s32.totalorder %s27, 0
      %p48 = por %p46, %p47
      %p49 = scmp.ne.s32.totalorder %s35, %s36
      %p50 = scmp.eq.s32.totalorder %s28, 1
      %p51 = por %p49, %p50
      %p53 = scmp.ne.s32.totalorder %s36, %s52
      %p54 = scmp.eq.s32.totalorder %s28, 0
      %p55 = por %p53, %p54
      %s56 = ssub.s32 %s22, %s29
      %p57 = scmp.eq.s32.totalorder %s56, 0
      %s59 = sadd.s32 %s58, 1
      %s60 = scalar_select %p57, %s58, %s59
      %p63 = pneg %p57
      %p64 = scmp.eq.s32.totalorder %s22, 1
      %p65 = por %p63, %p64
      %p66 = scmp.ne.s32.totalorder %s58, %s61
      %p67 = scmp.eq.s32.totalorder %s22, 0
      %p68 = por %p66, %p67
      %p69 = scmp.ne.s32.totalorder %s58, %s61
      %p70 = scmp.eq.s32.totalorder %s27, 1
      %p71 = por %p69, %p70
      %p72 = scmp.ne.s32.totalorder %s61, %s62
      %p73 = scmp.eq.s32.totalorder %s27, 0
      %p74 = por %p72, %p73
      %p75 = scmp.ne.s32.totalorder %s61, %s62
      %p76 = scmp.eq.s32.totalorder %s28, 1
      %p77 = por %p75, %p76
      %p79 = scmp.ne.s32.totalorder %s62, %s78
      %p80 = scmp.eq.s32.totalorder %s28, 0
      %p81 = por %p79, %p80
      %s82 = ssub.s32 %s22, %s29
      %p83 = scmp.eq.s32.totalorder %s82, 0
      %s85 = sadd.s32 %s84, 1
      %s86 = scalar_select %p83, %s84, %s85
      %p89 = pneg %p83
      %p90 = scmp.eq.s32.totalorder %s22, 1
      %p91 = por %p89, %p90
      %p92 = scmp.ne.s32.totalorder %s84, %s87
      %p93 = scmp.eq.s32.totalorder %s22, 0
      %p94 = por %p92, %p93
      %p95 = scmp.ne.s32.totalorder %s84, %s87
      %p96 = scmp.eq.s32.totalorder %s27, 1
      %p97 = por %p95, %p96
      %p98 = scmp.ne.s32.totalorder %s87, %s88
      %p99 = scmp.eq.s32.totalorder %s27, 0
      %p100 = por %p98, %p99
      %p101 = scmp.ne.s32.totalorder %s87, %s88
      %p102 = scmp.eq.s32.totalorder %s28, 1
      %p103 = por %p101, %p102
      %p105 = scmp.ne.s32.totalorder %s88, %s104
      %p106 = scmp.eq.s32.totalorder %s28, 0
      %p107 = por %p105, %p106
      %s108 = ssub.s32 %s22, %s29
      %p109 = scmp.eq.s32.totalorder %s108, 0
      %s111 = sadd.s32 %s110, 1
      %s112 = scalar_select %p109, %s110, %s111
      %p115 = pneg %p109
      %p116 = scmp.eq.s32.totalorder %s22, 1
      %p117 = por %p115, %p116
      %p118 = scmp.ne.s32.totalorder %s110, %s113
      %p119 = scmp.eq.s32.totalorder %s22, 0
      %p120 = por %p118, %p119
      %p121 = scmp.ne.s32.totalorder %s110, %s113
      %p122 = scmp.eq.s32.totalorder %s27, 1
      %p123 = por %p121, %p122
      %p124 = scmp.ne.s32.totalorder %s113, %s114
      %p125 = scmp.eq.s32.totalorder %s27, 0
      %p126 = por %p124, %p125
      %p127 = scmp.ne.s32.totalorder %s113, %s114
      %p128 = scmp.eq.s32.totalorder %s28, 1
      %p129 = por %p127, %p128
      %p131 = scmp.ne.s32.totalorder %s114, %s130
      %p132 = scmp.eq.s32.totalorder %s28, 0
      %p133 = por %p131, %p132
      %p134 = scmp.le.s32.totalorder 1, %s22
      %p135 = scmp.lt.s32.totalorder %s22, 3
      %p136 = pnand %p134, %p135
      %p137 = pneg %p136
      // Predicated region
      $region9: #{tpu_custom_call.1} parent=5 // pred_check
        _
      $region10: #{tpu_custom_call.1} parent=5 // pred_check_branch
        %139 = sbr.rel (%p136) target = $region12
      $region11: #{tpu_custom_call.1} parent=5 // pred_region
        %s140 = ssub.s32 %s22, 1
      $region12: #{tpu_custom_call.1} parent=5 // pred_fallthru
        _
      %p141 = scmp.lt.s32.totalorder %s22, 2
      // Predicated region
      $region13: #{tpu_custom_call.1} parent=5 // pred_check
        %p142 = pneg %p141
      $region14: #{tpu_custom_call.1} parent=5 // pred_check_branch
        %144 = sbr.rel (%p142) target = $region16
      $region15: #{tpu_custom_call.1} parent=5 // pred_region
        // Predicated region
        $region17: #{tpu_custom_call.1} parent=15 // pred_check
          %p145 = pneg %p42
        $region18: #{tpu_custom_call.1} parent=15 // pred_check_branch
          %147 = sbr.rel (%p145) target = $region20
        $region19: #{tpu_custom_call.1} parent=15 // pred_region
          %s148 = sand.u32 %s32, 1
          %s149 = scalar_lea.sflag [#allocation3], %s148
          %s150 = sand.u32 %s32, 1
          %s151 = smul.addr %s150, 8
          %s152 = scalar_lea.vmem [#allocation2], %s151
          %s154 = ssub.s32 128, 128
          %155 = vsyncadd %s149, %s154
          %s156 = smul.addr %s22, 128
          %s157 = scalar_lea.hbm %s0, %s156
          %s159 = sshll.u32 %s152, 4
          %s160 = int_to_ptr.vmem [resolvable:$true] %s159
          %162 = dma.hbm_to_vmem [thread:$0]  %s157, 128, %s160, %s149
        $region20: #{tpu_custom_call.1} parent=15 // pred_fallthru
          _
        // Predicated region
        $region21: #{tpu_custom_call.1} parent=15 // pred_check
          %p163 = pneg %p68
        $region22: #{tpu_custom_call.1} parent=15 // pred_check_branch
          %165 = sbr.rel (%p163) target = $region24
        $region23: #{tpu_custom_call.1} parent=15 // pred_region
          %s166 = sand.u32 %s58, 1
          %s167 = scalar_lea.sflag [#allocation6], %s166
          %s168 = sand.u32 %s58, 1
          %s169 = smul.addr %s168, 128
          %s170 = scalar_lea.vmem [#allocation5], %s169
          %s172 = ssub.s32 2048, 2048
          %173 = vsyncadd %s167, %s172
          %s174 = smul.addr %s22, 16
          %s175 = smul.addr %s174, 128
          %s176 = scalar_lea.hbm %s1, %s175
          %s177 = sshll.u32 %s170, 4
          %s178 = int_to_ptr.vmem [resolvable:$true] %s177
          %183 = dma.hbm_to_vmem [thread:$0]  %s176, 2048, %s178, %s167, 128, 128, 8
        $region24: #{tpu_custom_call.1} parent=15 // pred_fallthru
          _
      $region16: #{tpu_custom_call.1} parent=5 // pred_fallthru
        _
      %p184 = scmp.le.s32.totalorder 1, %s22
      %p185 = scmp.lt.s32.totalorder %s22, 3
      %p186 = pnand %p184, %p185
      %p187 = pneg %p186
      // Predicated region
      $region25: #{tpu_custom_call.1} parent=5 // pred_check
        _
      $region26: #{tpu_custom_call.1} parent=5 // pred_check_branch
        %189 = sbr.rel (%p186) target = $region28
      $region27: #{tpu_custom_call.1} parent=5 // pred_region
        %s190 = ssub.s32 %s22, 1
        %s191 = sand.u32 %s35, 1
        %s192 = scalar_lea.sflag [#allocation3], %s191
        %s193 = sand.u32 %s35, 1
        %s194 = smul.addr %s193, 8
        %s195 = scalar_lea.vmem [#allocation2], %s194
        // Predicated region
        $region29: #{tpu_custom_call.1} parent=27 // pred_check
          %p196 = pneg %p48
        $region30: #{tpu_custom_call.1} parent=27 // pred_check_branch
          %198 = sbr.rel (%p196) target = $region32
        $region31: #{tpu_custom_call.1} parent=27 // pred_region
          %199 = dma.done %s192, 128
        $region32: #{tpu_custom_call.1} parent=27 // pred_fallthru
          _
        %s200 = sand.u32 %s61, 1
        %s201 = scalar_lea.sflag [#allocation6], %s200
        %s202 = sand.u32 %s61, 1
        %s203 = smul.addr %s202, 128
        %s204 = scalar_lea.vmem [#allocation5], %s203
        // Predicated region
        $region33: #{tpu_custom_call.1} parent=27 // pred_check
          %p205 = pneg %p74
        $region34: #{tpu_custom_call.1} parent=27 // pred_check_branch
          %207 = sbr.rel (%p205) target = $region36
        $region35: #{tpu_custom_call.1} parent=27 // pred_region
          %208 = dma.done %s201, 2048
        $region36: #{tpu_custom_call.1} parent=27 // pred_fallthru
          _
        %s209 = sand.u32 %s35, 1
        %s210 = scalar_lea.sflag [#allocation3], %s209
        %s211 = sand.u32 %s35, 1
        %s212 = smul.addr %s211, 8
        %s213 = scalar_lea.vmem [#allocation2], %s212
        %p214 = pneg %p48
        %p215 = pneg %p45
        %s216 = sand.u32 %s61, 1
        %s217 = scalar_lea.sflag [#allocation6], %s216
        %s218 = sand.u32 %s61, 1
        %s219 = smul.addr %s218, 128
        %s220 = scalar_lea.vmem [#allocation5], %s219
        %p221 = pneg %p74
        %p222 = pneg %p71
        %p223 = pneg %p100
        %p224 = pneg %p97
        %s225 = sand.u32 %s87, 1
        %s226 = scalar_lea.sflag [#allocation4], %s225
        %s227 = sand.u32 %s87, 1
        %s228 = smul.addr %s227, 8
        %s229 = scalar_lea.vmem [#allocation7], %s228
        %p230 = pneg %p126
        %p231 = pneg %p123
        %s232 = sand.u32 %s113, 1
        %s233 = scalar_lea.sflag [#allocation9], %s232
        %s234 = sand.u32 %s113, 1
        %s235 = smul.addr %s234, 8
        %s236 = scalar_lea.vmem [#allocation8], %s235
        %v237 = vld [vmem:[%s195] sm:$0xff]
        %v238 = vld [vmem:[%s204] sm:$0xff]
        %v239 = vld [vmem:[%s204 + $0x8] sm:$0xff]
        %v240 = vld [vmem:[%s204 + $0x10] sm:$0xff]
        %v241 = vld [vmem:[%s204 + $0x18] sm:$0xff]
        %v242 = vld [vmem:[%s204 + $0x20] sm:$0xff]
        %v243 = vld [vmem:[%s204 + $0x28] sm:$0xff]
        %v244 = vld [vmem:[%s204 + $0x30] sm:$0xff]
        %v245 = vld [vmem:[%s204 + $0x38] sm:$0xff]
        %v246 = vld [vmem:[%s204 + $0x40] sm:$0xff]
        %v247 = vld [vmem:[%s204 + $0x48] sm:$0xff]
        %v248 = vld [vmem:[%s204 + $0x50] sm:$0xff]
        %v249 = vld [vmem:[%s204 + $0x58] sm:$0xff]
        %v250 = vld [vmem:[%s204 + $0x60] sm:$0xff]
        %v251 = vld [vmem:[%s204 + $0x68] sm:$0xff]
        %v252 = vld [vmem:[%s204 + $0x70] sm:$0xff]
        %v253 = vld [vmem:[%s204 + $0x78] sm:$0xff]
        %254 = vmatprep.subr.mxu0 0.0
        %255 = vmatpush1.xpose.msra.mxu0 %v238
        %256 = vmatprep.subr.mxu0 0.0
        %257 = vmatpush1.xpose.msra.mxu0 %v239
        %258 = vmatprep.subr.mxu0 0.0
        %259 = vmatpush1.xpose.msra.mxu0 %v240
        %260 = vmatprep.subr.mxu0 0.0
        %261 = vmatpush1.xpose.msra.mxu0 %v241
        %262 = vmatprep.subr.mxu0 0.0
        %263 = vmatpush1.xpose.msra.mxu0 %v242
        %264 = vmatprep.subr.mxu0 0.0
        %265 = vmatpush1.xpose.msra.mxu0 %v243
        %266 = vmatprep.subr.mxu0 0.0
        %267 = vmatpush1.xpose.msra.mxu0 %v244
        %268 = vmatprep.subr.mxu0 0.0
        %269 = vmatpush1.xpose.msra.mxu0 %v245
        %270 = vmatprep.subr.mxu0 0.0
        %271 = vmatpush1.xpose.msra.mxu0 %v246
        %272 = vmatprep.subr.mxu0 0.0
        %273 = vmatpush1.xpose.msra.mxu0 %v247
        %274 = vmatprep.subr.mxu0 0.0
        %275 = vmatpush1.xpose.msra.mxu0 %v248
        %276 = vmatprep.subr.mxu0 0.0
        %277 = vmatpush1.xpose.msra.mxu0 %v249
        %278 = vmatprep.subr.mxu0 0.0
        %279 = vmatpush1.xpose.msra.mxu0 %v250
        %280 = vmatprep.subr.mxu0 0.0
        %281 = vmatpush1.xpose.msra.mxu0 %v251
        %282 = vmatprep.subr.mxu0 0.0
        %283 = vmatpush1.xpose.msra.mxu0 %v252
        %284 = vmatprep.subr.mxu0 0.0
        %285 = vmatpush1.xpose.msra.mxu0 %v253
        %286 = vmatprep.subr.mxu0 0.0
        %287 = vmatpush1.xpose.msra.mxu0 0.0
        %288 = vmatprep.subr.mxu0 0.0
        %289 = vmatpush1.xpose.msra.mxu0 0.0
        %290 = vmatprep.subr.mxu0 0.0
        %291 = vmatpush1.xpose.msra.mxu0 0.0
        %292 = vmatprep.subr.mxu0 0.0
        %293 = vmatpush1.xpose.msra.mxu0 0.0
        %294 = vmatprep.subr.mxu0 0.0
        %295 = vmatpush1.xpose.msra.mxu0 0.0
        %296 = vmatprep.subr.mxu0 0.0
        %297 = vmatpush1.xpose.msra.mxu0 0.0
        %298 = vmatprep.subr.mxu0 0.0
        %299 = vmatpush1.xpose.msra.mxu0 0.0
        %300 = vmatprep.subr.mxu0 0.0
        %301 = vmatpush1.xpose.msra.mxu0 0.0
        %302 = vmatprep.subr.mxu0 0.0
        %303 = vmatpush1.xpose.msra.mxu0 0.0
        %304 = vmatprep.subr.mxu0 0.0
        %305 = vmatpush1.xpose.msra.mxu0 0.0
        %306 = vmatprep.subr.mxu0 0.0
        %307 = vmatpush1.xpose.msra.mxu0 0.0
        %308 = vmatprep.subr.mxu0 0.0
        %309 = vmatpush1.xpose.msra.mxu0 0.0
        %310 = vmatprep.subr.mxu0 0.0
        %311 = vmatpush1.xpose.msra.mxu0 0.0
        %312 = vmatprep.subr.mxu0 0.0
        %313 = vmatpush1.xpose.msra.mxu0 0.0
        %314 = vmatprep.subr.mxu0 0.0
        %315 = vmatpush1.xpose.msra.mxu0 0.0
        %316 = vmatprep.subr.mxu0 0.0
        %317 = vmatpush1.xpose.msra.mxu0 0.0
        %318 = vmatprep.mubr.f32.mxu0 0.0
        %319 = vmatmul.mubr.f32.gmra.mrb[0].mxu0 %v237
        %v320 = vpop.f32.mrb[0].mxu0
        %v321 = vadd.f32 0.0, %v320
        %v322 = vpop.f32.mrb[0].mxu0
        %323 = vdwg.mxu0
        %v324 = vlaneseq
        %v325 = vand.u32 %v324, 127
        %vm326 = vcmp.lt.s32.totalorder %v325, 8
        %v327 = vsel %vm326, %v321, -3.4028235e+38
        %328 = vmax.xlane.f32.xlu0 %v327
        %v329 = vpop.xlane.xlu0 %328
        %v330 = vsub.f32 %v327, %v329
        %v331 = vmul.f32 %v330, 1.442695
        %v332 = vpow.pop %v331
        %333 = vadd.xlane.f32.xlu0 %v332
        %v334 = vpop.xlane.xlu0 %333
        %v335 = vrcp.pop %v334
        %v336 = vmul.f32 %v334, %v335
        %v337 = vsub.f32 2.0, %v336
        %v338 = vmul.f32 %v335, %v337
        %v339 = vmul.f32 %v332, %v338
        %340 = vmatprep.subr.mxu0 0.0
        %341 = vmatpush1.msra.mxu0 %v238
        %342 = vmatprep.subr.mxu0 0.0
        %343 = vmatpush1.msra.mxu0 %v239
        %344 = vmatprep.subr.mxu0 0.0
        %345 = vmatpush1.msra.mxu0 %v240
        %346 = vmatprep.subr.mxu0 0.0
        %347 = vmatpush1.msra.mxu0 %v241
        %348 = vmatprep.subr.mxu0 0.0
        %349 = vmatpush1.msra.mxu0 %v242
        %350 = vmatprep.subr.mxu0 0.0
        %351 = vmatpush1.msra.mxu0 %v243
        %352 = vmatprep.subr.mxu0 0.0
        %353 = vmatpush1.msra.mxu0 %v244
        %354 = vmatprep.subr.mxu0 0.0
        %355 = vmatpush1.msra.mxu0 %v245
        %356 = vmatprep.subr.mxu0 0.0
        %357 = vmatpush1.msra.mxu0 %v246
        %358 = vmatprep.subr.mxu0 0.0
        %359 = vmatpush1.msra.mxu0 %v247
        %360 = vmatprep.subr.mxu0 0.0
        %361 = vmatpush1.msra.mxu0 %v248
        %362 = vmatprep.subr.mxu0 0.0
        %363 = vmatpush1.msra.mxu0 %v249
        %364 = vmatprep.subr.mxu0 0.0
        %365 = vmatpush1.msra.mxu0 %v250
        %366 = vmatprep.subr.mxu0 0.0
        %367 = vmatpush1.msra.mxu0 %v251
        %368 = vmatprep.subr.mxu0 0.0
        %369 = vmatpush1.msra.mxu0 %v252
        %370 = vmatprep.subr.mxu0 0.0
        %371 = vmatpush1.msra.mxu0 %v253
        %372 = vmatprep.subr.mxu0 0.0
        %373 = vmatpush1.msra.mxu0 0.0
        %374 = vmatprep.subr.mxu0 0.0
        %375 = vmatpush1.msra.mxu0 0.0
        %376 = vmatprep.subr.mxu0 0.0
        %377 = vmatpush1.msra.mxu0 0.0
        %378 = vmatprep.subr.mxu0 0.0
        %379 = vmatpush1.msra.mxu0 0.0
        %380 = vmatprep.subr.mxu0 0.0
        %381 = vmatpush1.msra.mxu0 0.0
        %382 = vmatprep.subr.mxu0 0.0
        %383 = vmatpush1.msra.mxu0 0.0
        %384 = vmatprep.subr.mxu0 0.0
        %385 = vmatpush1.msra.mxu0 0.0
        %386 = vmatprep.subr.mxu0 0.0
        %387 = vmatpush1.msra.mxu0 0.0
        %388 = vmatprep.subr.mxu0 0.0
        %389 = vmatpush1.msra.mxu0 0.0
        %390 = vmatprep.subr.mxu0 0.0
        %391 = vmatpush1.msra.mxu0 0.0
        %392 = vmatprep.subr.mxu0 0.0
        %393 = vmatpush1.msra.mxu0 0.0
        %394 = vmatprep.subr.mxu0 0.0
        %395 = vmatpush1.msra.mxu0 0.0
        %396 = vmatprep.subr.mxu0 0.0
        %397 = vmatpush1.msra.mxu0 0.0
        %398 = vmatprep.subr.mxu0 0.0
        %399 = vmatpush1.msra.mxu0 0.0
        %400 = vmatprep.subr.mxu0 0.0
        %401 = vmatpush1.msra.mxu0 0.0
        %402 = vmatprep.subr.mxu0 0.0
        %403 = vmatpush1.msra.mxu0 0.0
        %404 = vmatprep.mubr.f32.mxu0 0.0
        %405 = vmatmul.mubr.f32.gmra.mrb[0].mxu0 %v339
        %v406 = vpop.f32.mrb[0].mxu0
        %v407 = vadd.f32 0.0, %v406
        %v408 = vpop.f32.mrb[0].mxu0
        %409 = vdwg.mxu0
        %410 = vst [vmem:[%s236] sm:$0xff] %v339
        %411 = vst [vmem:[%s229] sm:$0xff] %v407
        %s412 = sand.u32 %s87, 1
        %s413 = scalar_lea.sflag [#allocation4], %s412
        %s414 = sand.u32 %s87, 1
        %s415 = smul.addr %s414, 8
        %s416 = scalar_lea.vmem [#allocation7], %s415
        %s417 = sand.u32 %s113, 1
        %s418 = scalar_lea.sflag [#allocation9], %s417
        %s419 = sand.u32 %s113, 1
        %s420 = smul.addr %s419, 8
        %s421 = scalar_lea.vmem [#allocation8], %s420
        // Predicated region
        $region37: #{tpu_custom_call.1} parent=27 // pred_check
          %p422 = pneg %p97
        $region38: #{tpu_custom_call.1} parent=27 // pred_check_branch
          %424 = sbr.rel (%p422) target = $region40
        $region39: #{tpu_custom_call.1} parent=27 // pred_region
          %s426 = ssub.s32 128, 128
          %427 = vsyncadd %s413, %s426
          %s428 = smul.addr %s27, 128
          %s429 = scalar_lea.hbm %s2, %s428
          %s431 = sshll.u32 %s416, 4
          %s432 = int_to_ptr.vmem [resolvable:$true] %s431
          %434 = dma.vmem_to_hbm [thread:$0]  %s432, 128, %s429, %s413
        $region40: #{tpu_custom_call.1} parent=27 // pred_fallthru
          _
        // Predicated region
        $region41: #{tpu_custom_call.1} parent=27 // pred_check
          %p435 = pneg %p123
        $region42: #{tpu_custom_call.1} parent=27 // pred_check_branch
          %437 = sbr.rel (%p435) target = $region44
        $region43: #{tpu_custom_call.1} parent=27 // pred_region
          %s439 = ssub.s32 128, 128
          %440 = vsyncadd %s418, %s439
          %s441 = smul.addr %s27, 128
          %s442 = scalar_lea.hbm %s3, %s441
          %s444 = sshll.u32 %s421, 4
          %s445 = int_to_ptr.vmem [resolvable:$true] %s444
          %447 = dma.vmem_to_hbm [thread:$0]  %s445, 128, %s442, %s418
        $region44: #{tpu_custom_call.1} parent=27 // pred_fallthru
          _
      $region28: #{tpu_custom_call.1} parent=5 // pred_fallthru
        _
      %p448 = scmp.le.s32.totalorder 2, %s22
      // Predicated region
      $region45: #{tpu_custom_call.1} parent=5 // pred_check
        %p449 = pneg %p448
      $region46: #{tpu_custom_call.1} parent=5 // pred_check_branch
        %451 = sbr.rel (%p449) target = $region48
      $region47: #{tpu_custom_call.1} parent=5 // pred_region
        %s452 = ssub.s32 %s22, 2
        // Predicated region
        $region49: #{tpu_custom_call.1} parent=47 // pred_check
          %p453 = pneg %p103
        $region50: #{tpu_custom_call.1} parent=47 // pred_check_branch
          %455 = sbr.rel (%p453) target = $region52
        $region51: #{tpu_custom_call.1} parent=47 // pred_region
          %s456 = sand.u32 %s88, 1
          %s457 = scalar_lea.sflag [#allocation4], %s456
          %s458 = sand.u32 %s88, 1
          %s459 = smul.addr %s458, 8
          %s460 = scalar_lea.vmem [#allocation7], %s459
          %461 = dma.done %s457, 128
        $region52: #{tpu_custom_call.1} parent=47 // pred_fallthru
          _
        // Predicated region
        $region53: #{tpu_custom_call.1} parent=47 // pred_check
          %p462 = pneg %p129
        $region54: #{tpu_custom_call.1} parent=47 // pred_check_branch
          %464 = sbr.rel (%p462) target = $region56
        $region55: #{tpu_custom_call.1} parent=47 // pred_region
          %s465 = sand.u32 %s114, 1
          %s466 = scalar_lea.sflag [#allocation9], %s465
          %s467 = sand.u32 %s114, 1
          %s468 = smul.addr %s467, 8
          %s469 = scalar_lea.vmem [#allocation8], %s468
          %470 = dma.done %s466, 128
        $region56: #{tpu_custom_call.1} parent=47 // pred_fallthru
          _
      $region48: #{tpu_custom_call.1} parent=5 // pred_fallthru
        _
    $region6: #{tpu_custom_call.1} parent=1 // loop_footer
      %s26 = sadd.s32 1, %s22
    $region7: #{tpu_custom_call.1} parent=1 // loop_footer_branch
      %21 = sbr.rel target = $region3
    $region8: #{tpu_custom_call.1} parent=1 // loop_exit
      _
    %471 = vsyncpa [#allocation3], 1
    %s472 = scalar_lea.sflag [#allocation3], 1
    %473 = vsyncpa %s472, 1
    %474 = vsyncpa [#allocation6], 1
    %s475 = scalar_lea.sflag [#allocation6], 1
    %476 = vsyncpa %s475, 1
    %477 = vsyncpa [#allocation4], 1
    %s478 = scalar_lea.sflag [#allocation4], 1
    %479 = vsyncpa %s478, 1
    %480 = vsyncpa [#allocation9], 1
    %s481 = scalar_lea.sflag [#allocation9], 1
    %482 = vsyncpa %s481, 1

</llo_original>
